<compile_context>
chip_gen: v7x
topology: tpu7x:2x2x1
jax: 0.10.0
libtpu: 0.0.40
codegen_flags: <defaults>
</compile_context>

<pallas_src>
import functools

import jax
import jax.numpy as jnp
from jax.experimental import pallas as pl
from jax.experimental.pallas import tpu as pltpu

_EPS = 1e-5  # nn.InstanceNorm2d default eps, affine=False, biased variance.

# padding_type of the module -> internal kernel mode / jnp.pad mode (reference).
_KERNEL_PAD = {"reflect": "reflect", "replicate": "edge", "zeros": "zeros", "circular": "wrap"}
_JNP_PAD = {"reflect": "reflect", "replicate": "edge", "zeros": "constant", "circular": "wrap"}


@functools.lru_cache(maxsize=None)
def _roll_delta_sign() -> int:
    """One-time compiled probe of pltpu.roll's rotate direction.

    Returns s such that pltpu.roll(t, (s * delta) % n, axis)[p] == t[p + delta]
    (guards the kernel against rotate-convention differences across versions).
    """
    x = jnp.broadcast_to(jnp.arange(128, dtype=jnp.int32), (8, 128))

    def probe_kernel(x_ref, o_ref):
        o_ref[...] = pltpu.roll(x_ref[...], 1, 1)

    y = pl.pallas_call(probe_kernel,
                       out_shape=jax.ShapeDtypeStruct((8, 128), jnp.int32))(x)
    # jnp.roll convention: result[i] = input[i - shift]  ->  y[0, 0] == 127.
    return -1 if int(y[0, 0]) == 127 else 1


def _block_kernel(x_ref, coords_ref,
                  dw1_w, dw1_b, pw1_w, pw1_b,
                  dw2_w, dw2_b, pw2_w, pw2_b,
                  out_ref, *, C, H, W, pad_mode, roll_sign):
    """Fused MobileResnetBlock_attn forward for one image, on a (C, H*W) slab."""
    HW = H * W
    f32 = jnp.float32
    x = x_ref[0].astype(f32)                               # (C, HW)

    # ---- boundary masks (shared by both depthwise stages) --------------------
    cw = jnp.broadcast_to(coords_ref[0:1, :], (C, HW))     # w index per lane
    rh = jnp.broadcast_to(coords_ref[1:2, :], (C, HW))     # h index per lane
    first_col, last_col = cw == 0, cw == W - 1
    first_row, last_row = rh == 0, rh == H - 1

    def shift(t, delta):
        # value at flattened index p + delta (wrapped lanes are masked by callers)
        amt = (roll_sign * delta) % HW
        return pltpu.roll(t, amt, 1) if amt else t

    def shifted_pair(t, step, n, lo_mask, hi_mask):
        """(neighbor at -step, neighbor at +step) along one image axis, padded.

        `step` is the flattened stride of the axis (1 for W, W for H), `n` its
        extent; lo/hi masks mark the border positions that take padding values.
        """
        minus, plus = shift(t, -step), shift(t, step)
        if pad_mode == "reflect":
            pad_lo, pad_hi = plus, minus
        elif pad_mode == "edge":
            pad_lo = pad_hi = t
        elif pad_mode == "wrap":
            pad_lo, pad_hi = shift(t, (n - 1) * step), shift(t, -(n - 1) * step)
        else:  # zeros
            pad_lo = pad_hi = jnp.zeros_like(t)
        return jnp.where(lo_mask, pad_lo, minus), jnp.where(hi_mask, pad_hi, plus)

    def depthwise3x3(t, w_ref, b_ref):
        # torch Conv2d(groups=C) cross-correlation; taps stored as (C, 9), dy*3+dx.
        cm1, cp1 = shifted_pair(t, 1, W, first_col, last_col)   # dx = -1 / +1
        acc = jnp.zeros((C, HW), f32)
        for dx_i, cs in enumerate((cm1, t, cp1)):
            rm1, rp1 = shifted_pair(cs, W, H, first_row, last_row)  # dy = -1 / +1
            for dy_i, v in enumerate((rm1, cs, rp1)):
                tap = dy_i * 3 + dx_i
                acc = acc + v * w_ref[:, tap:tap + 1].astype(f32)   # (C,1) bcast
        return acc + b_ref[...].astype(f32)                        # (C,1) bias

    def inorm(t):
        mu = jnp.mean(t, axis=1, keepdims=True)                    # (C,1)
        d = t - mu
        var = jnp.mean(d * d, axis=1, keepdims=True)
        return d * jax.lax.rsqrt(var + _EPS)

    def pointwise(t, w_ref, b_ref):
        # 1x1 conv on the MXU: (C_out, C_in) @ (C_in, HW), fp32 accumulate.
        z = jnp.dot(w_ref[...].astype(f32), t,
                    preferred_element_type=f32,
                    precision=jax.lax.Precision.HIGHEST)
        return z + b_ref[...].astype(f32)

    # ---- stage 1: SeparableConv2d -> IN -> relu ------------------------------
    y = inorm(depthwise3x3(x, dw1_w, dw1_b))
    y = jnp.maximum(inorm(pointwise(y, pw1_w, pw1_b)), 0.0)
    # ---- stage 2: SeparableConv2d -> IN -> residual add ----------------------
    z = inorm(depthwise3x3(y, dw2_w, dw2_b))
    z = inorm(pointwise(z, pw2_w, pw2_b))
    out_ref[0] = (x + z).astype(out_ref.dtype)


def mobile_resnet_block_attn(x, params, padding_type="reflect", kernel=3):
    """Forward pass of MobileResnetBlock_attn. x: (B, C, H, W) float32 (NCHW)."""
    if kernel != 3:
        raise NotImplementedError("module hard-codes padding=1; only kernel=3 keeps shapes")
    B, C, H, W = x.shape
    HW = H * W
    pad_mode = _KERNEL_PAD[padding_type]

    # (w, h) index of every flattened position -- used for the padding masks.
    pos = jnp.arange(HW, dtype=jnp.int32)
    coords = jnp.stack([pos % W, pos // W], axis=0)        # (2, HW)

    weights = (params["dw1_w"], params["dw1_b"], params["pw1_w"], params["pw1_b"],
               params["dw2_w"], params["dw2_b"], params["pw2_w"], params["pw2_b"])

    kfn = functools.partial(_block_kernel, C=C, H=H, W=W, pad_mode=pad_mode,
                            roll_sign=_roll_delta_sign())

    act_spec = pl.BlockSpec((1, C, HW), lambda b: (b, 0, 0))
    coords_spec = pl.BlockSpec((2, HW), lambda b: (0, 0))
    w_specs = [pl.BlockSpec(w.shape, lambda b: (0, 0)) for w in weights]

    out = pl.pallas_call(
        kfn,
        out_shape=jax.ShapeDtypeStruct((B, C, HW), jnp.float32),
        grid=(B,),
        in_specs=[act_spec, coords_spec] + w_specs,
        out_specs=act_spec,
        input_output_aliases={0: 0},   # residual input buffer doubles as output
        compiler_params=pltpu.CompilerParams(
            dimension_semantics=("parallel",),
            vmem_limit_bytes=64 * 1024 * 1024),
    )(x.reshape(B, C, HW).astype(jnp.float32), coords, *weights)
    return out.reshape(B, C, H, W)


# ---------------- pure-JAX reference (for correctness check only) ----------------

def _ref_instance_norm(t):
    mu = t.mean(axis=(2, 3), keepdims=True)
    var = ((t - mu) ** 2).mean(axis=(2, 3), keepdims=True)
    return (t - mu) / jnp.sqrt(var + _EPS)


def _ref_sep_conv(x, dw_w, dw_b, pw_w, pw_b, np_pad_mode):
    B, C, H, W = x.shape
    xp = jnp.pad(x, ((0, 0), (0, 0), (1, 1), (1, 1)), mode=np_pad_mode)
    w_dw = dw_w.reshape(C, 3, 3)[:, None, :, :]            # (C,1,3,3) OIHW, groups=C
    y = jax.lax.conv_general_dilated(
        xp, w_dw, window_strides=(1, 1), padding="VALID",
        dimension_numbers=("NCHW", "OIHW", "NCHW"),
        feature_group_count=C, precision=jax.lax.Precision.HIGHEST)
    y = _ref_instance_norm(y + dw_b.reshape(1, C, 1, 1))
    z = jnp.einsum("oi,bihw->bohw", pw_w, y, precision=jax.lax.Precision.HIGHEST)
    z = _ref_instance_norm(z + pw_b.reshape(1, C, 1, 1))
    return z


def _ref_block(x, params, np_pad_mode):
    h = jax.nn.relu(_ref_sep_conv(x, params["dw1_w"], params["dw1_b"],
                                  params["pw1_w"], params["pw1_b"], np_pad_mode))
    z = _ref_sep_conv(h, params["dw2_w"], params["dw2_b"],
                      params["pw2_w"], params["pw2_b"], np_pad_mode)
    return x + z


if __name__ == "__main__":
    B, C, H, W = 2, 4, 16, 16
    K = 3  # module args: kernel=3, stride=1, padding=1, padding_type='reflect'

    key = jax.random.PRNGKey(0)
    ks = jax.random.split(key, 9)
    x = jax.random.normal(ks[0], (B, C, H, W), jnp.float32)

    std = 0.1  # deterministic synthetic init (module's weight_init uses N(mean, std))
    params = {
        # depthwise weights packed 2-D as (C, K*K), tap index = dy*K + dx
        "dw1_w": std * jax.random.normal(ks[1], (C, K * K), jnp.float32),
        "dw1_b": std * jax.random.normal(ks[2], (C, 1), jnp.float32),
        # pointwise weights packed 2-D as (C_out, C_in)  (= torch weight[:, :, 0, 0])
        "pw1_w": std * jax.random.normal(ks[3], (C, C), jnp.float32),
        "pw1_b": std * jax.random.normal(ks[4], (C, 1), jnp.float32),
        "dw2_w": std * jax.random.normal(ks[5], (C, K * K), jnp.float32),
        "dw2_b": std * jax.random.normal(ks[6], (C, 1), jnp.float32),
        "pw2_w": std * jax.random.normal(ks[7], (C, C), jnp.float32),
        "pw2_b": std * jax.random.normal(ks[8], (C, 1), jnp.float32),
    }

    out = mobile_resnet_block_attn(x, params, padding_type="reflect", kernel=K)
    out = jax.block_until_ready(out)

    ref = _ref_block(x, params, _JNP_PAD["reflect"])
    err = float(jnp.max(jnp.abs(out - ref)))
    assert out.shape == (B, C, H, W) and out.dtype == jnp.float32
    assert err < 1e-3, f"mismatch vs reference: {err}"
    print("KERNEL_OK")
</pallas_src>

<mosaic_0001>
module attributes {stable_mosaic.version = 11 : i64} {
  func.func @probe_kernel(%arg0: memref<8x128xi32, #tpu.memory_space<vmem>>, %arg1: memref<8x128xi32, #tpu.memory_space<vmem>>) attributes {dimension_semantics = [], scalar_prefetch = 0 : i64, scratch_operands = 0 : i64, tpu.core_type = #tpu.core_type<tc>} {
    %c0 = arith.constant 0 : index
    %c0_0 = arith.constant 0 : index
    %0 = vector.load %arg0[%c0, %c0_0] : memref<8x128xi32, #tpu.memory_space<vmem>>, vector<8x128xi32>
    %c1_i32 = arith.constant 1 : i32
    %1 = tpu.dynamic_rotate %0 by %c1_i32 dim 1 : vector<8x128xi32>, i32 -> vector<8x128xi32>
    %c0_1 = arith.constant 0 : index
    %c0_2 = arith.constant 0 : index
    %2 = vector.load %arg1[%c0_1, %c0_2] : memref<8x128xi32, #tpu.memory_space<vmem>>, vector<8x128xi32>
    tpu.vector_store %arg1[%c0_1, %c0_2], %1 {strides = array<i32>} : memref<8x128xi32, #tpu.memory_space<vmem>>, vector<8x128xi32>,
    return
  }
}

</mosaic_0001>

<llo_original>
// kernel: tpu_custom_call.1
$region0: #{tpu_custom_call.1}
  #allocation0 [shape = 'u32[]', space=smem, size = 0x4, offset = 0x4, fixed_abs, tag = 'smem constant byte address 0x4 - core index']
  #allocation1 [shape = 'u32[144,128]{1,0:T(1,128)}', space=vmem, size = 0x12000, scoped, tag = 'internal scratch']
  %s0 = inlined_call_operand.hbm [shape: s32[8,128], index: 0, kind: input, shape index: {}]
  %s1 = inlined_call_operand.hbm [shape: s32[8,128], index: 1, kind: output, shape index: {}]
  %s2 = sld [smem:[#allocation0]]
  $region18: #{tpu_custom_call.1} parent=0
    _
  %s4 = ssub.s32 1, %s2
  %s5 = scalar_select 0, %s4, %s2
  $region1: #{tpu_custom_call.1} parent=0
    #allocation2 [shape = 'u8[4096]{0}', space=vmem, size = 0x1000, scoped, tag = 'input window, operand 0, single buffered']
    #allocation3 [shape = 's32[1]{0}', space=sflag, size = 0x4, scoped, tag = 'scoped memory for tpu_custom_call.1']
    #allocation4 [shape = 's32[1]{0}', space=sflag, size = 0x4, scoped, tag = 'scoped memory for tpu_custom_call.1']
    #allocation5 [shape = 'u8[4096]{0}', space=vmem, size = 0x1000, scoped, tag = 'output window, operand 0, single buffered']
    %6 = vsyncpa [#allocation3], 0
    %7 = vsyncpa [#allocation4], 0
    // Predicated region
    $region2: #{tpu_custom_call.1} parent=1 // pred_check
      _
    $region3: #{tpu_custom_call.1} parent=1 // pred_check_branch
      %9 = sbr.rel (0) target = $region5
    $region4: #{tpu_custom_call.1} parent=1 // pred_region
      %s11 = ssub.s32 128, 128
      %12 = vsyncadd [#allocation3], %s11
      %s14 = sshll.u32 [#allocation2], 4
      %s15 = int_to_ptr.vmem [resolvable:$true] %s14
      %17 = dma.hbm_to_vmem [thread:$0]  %s0, 128, %s15, [#allocation3]
    $region5: #{tpu_custom_call.1} parent=1 // pred_fallthru
      _
    // Predicated region
    $region6: #{tpu_custom_call.1} parent=1 // pred_check
      _
    $region7: #{tpu_custom_call.1} parent=1 // pred_check_branch
      %19 = sbr.rel (0) target = $region9
    $region8: #{tpu_custom_call.1} parent=1 // pred_region
      %20 = dma.done [#allocation3], 128
    $region9: #{tpu_custom_call.1} parent=1 // pred_fallthru
      _
    %v21 = vld [vmem:[#allocation2] sm:$0xff]
    %22 = vrot.lane.b32.xlu0 %v21, 1
    %v23 = vpop.permute.xlu0 %22
    %24 = vst [vmem:[#allocation5] sm:$0xff] %v23
    // Predicated region
    $region10: #{tpu_custom_call.1} parent=1 // pred_check
      _
    $region11: #{tpu_custom_call.1} parent=1 // pred_check_branch
      %26 = sbr.rel (0) target = $region13
    $region12: #{tpu_custom_call.1} parent=1 // pred_region
      %s28 = ssub.s32 128, 128
      %29 = vsyncadd [#allocation4], %s28
      %s31 = sshll.u32 [#allocation5], 4
      %s32 = int_to_ptr.vmem [resolvable:$true] %s31
      %34 = dma.vmem_to_hbm [thread:$0]  %s32, 128, %s1, [#allocation4]
    $region13: #{tpu_custom_call.1} parent=1 // pred_fallthru
      _
    // Predicated region
    $region14: #{tpu_custom_call.1} parent=1 // pred_check
      _
    $region15: #{tpu_custom_call.1} parent=1 // pred_check_branch
      %36 = sbr.rel (0) target = $region17
    $region16: #{tpu_custom_call.1} parent=1 // pred_region
      %37 = dma.done [#allocation4], 128
    $region17: #{tpu_custom_call.1} parent=1 // pred_fallthru
      _
    %38 = vsyncpa [#allocation3], 1
    %39 = vsyncpa [#allocation4], 1

</llo_original>
